<compile_context>
chip_gen: v7x
topology: tpu7x:2x2x1
jax: 0.10.0
libtpu: 0.0.40
codegen_flags: <defaults>
</compile_context>

<pallas_src>
import functools
import math

import jax
import jax.numpy as jnp
from jax.experimental import pallas as pl
from jax.experimental.pallas import tpu as pltpu

LANE = 128
SUBLANE = 8
LEAKY_SLOPE = 0.01  # PyTorch nn.LeakyReLU() default
BN_EPS = 1e-5       # PyTorch nn.BatchNorm1d default


def _round_up(n, m):
    return ((n + m - 1) // m) * m


# ----------------------------------------------------------------------------
# Fused MLP kernel: one batch tile, all layers, intermediates stay on-chip.
# ----------------------------------------------------------------------------
def _fused_mlp_kernel(*refs, plan):
    """refs = (x_ref, *param_refs, o_ref).

    `plan` is a static tuple of (kind, act) with kind in
    {"linear", "affine", "act"} and act in {"none", "relu", "leaky_relu"}.
    "linear" consumes (W, b) refs, "affine" consumes (scale, shift) refs
    (folded eval-mode BatchNorm), "act" consumes no refs.
    """
    x_ref = refs[0]
    o_ref = refs[-1]
    param_refs = refs[1:-1]

    h = x_ref[...].astype(jnp.float32)
    p = 0
    for kind, act in plan:
        if kind == "linear":
            w = param_refs[p][...]
            b = param_refs[p + 1][...]
            p += 2
            h = jnp.dot(h, w, preferred_element_type=jnp.float32) + b
        elif kind == "affine":
            s = param_refs[p][...]
            t = param_refs[p + 1][...]
            p += 2
            h = h * s + t
        # fused activation (VPU filler while the next MXU op is pending)
        if act == "relu":
            h = jnp.maximum(h, 0.0)
        elif act == "leaky_relu":
            h = jnp.where(h >= 0.0, h, LEAKY_SLOPE * h)
    o_ref[...] = h.astype(o_ref.dtype)


# ----------------------------------------------------------------------------
# Parameter construction (mirrors PyTorch layer list, eval-mode defaults)
# ----------------------------------------------------------------------------
def init_params(key, input_size, layers_config):
    """Deterministic init mirroring PyTorch shapes (Linear ~ U(-1/sqrt(fan_in), ..))."""
    params = []
    prev = input_size
    for layer in layers_config:
        name = layer["name"]
        if name == "Linear":
            units = int(layer["units"])
            key, kw, kb = jax.random.split(key, 3)
            bound = 1.0 / math.sqrt(prev)
            w = jax.random.uniform(kw, (prev, units), jnp.float32, -bound, bound)
            b = jax.random.uniform(kb, (units,), jnp.float32, -bound, bound)
            params.append(("linear", (w, b)))
            prev = units
        elif name == "ReLU":
            params.append(("relu", None))
        elif name == "LeakyReLU":
            params.append(("leaky_relu", None))
        elif name == "BatchNorm":
            # PyTorch defaults: gamma=1, beta=0, running_mean=0, running_var=1
            params.append(
                (
                    "batchnorm",
                    (
                        jnp.ones((prev,), jnp.float32),
                        jnp.zeros((prev,), jnp.float32),
                        jnp.zeros((prev,), jnp.float32),
                        jnp.ones((prev,), jnp.float32),
                    ),
                )
            )
        elif name == "Dropout":
            params.append(("dropout", float(layer["rate"])))
    # final Linear(prev, 1)
    key, kw, kb = jax.random.split(key, 3)
    bound = 1.0 / math.sqrt(prev)
    w = jax.random.uniform(kw, (prev, 1), jnp.float32, -bound, bound)
    b = jax.random.uniform(kb, (1,), jnp.float32, -bound, bound)
    params.append(("linear", (w, b)))
    return params


def prepare_fused_params(params, input_size):
    """Fold BN-after-Linear into the Linear, fuse activations, drop eval-mode
    dropout, and zero-pad all feature dims to multiples of 128 (lane-dense)."""
    # pass 1: fold / fuse into a compact op list
    ops = []  # each entry: [kind, p0, p1, act]
    for kind, payload in params:
        if kind == "linear":
            w, b = payload
            ops.append(["linear", w, b, "none"])
        elif kind in ("relu", "leaky_relu"):
            if ops and ops[-1][3] == "none":
                ops[-1][3] = kind
            else:
                ops.append(["act", None, None, kind])
        elif kind == "batchnorm":
            gamma, beta, mean, var = payload
            scale = gamma * jax.lax.rsqrt(var + BN_EPS)
            shift = beta - mean * scale
            if ops and ops[-1][0] == "linear" and ops[-1][3] == "none":
                # exact fold: (x@W + b)*scale + shift == x@(W*scale) + (b*scale + shift)
                ops[-1][1] = ops[-1][1] * scale[None, :]
                ops[-1][2] = ops[-1][2] * scale + shift
            else:
                ops.append(["affine", scale, shift, "none"])
        elif kind == "dropout":
            # TODO(synk): eval-mode identity; train-mode stochastic dropout would
            # need pltpu.prng_seed / pltpu.prng_random_bits inside the kernel.
            pass

    # pass 2: pad everything to lane-dense shapes and build the static plan
    plan = []
    flat_params = []
    cur = input_size
    in_pad = _round_up(input_size, LANE)
    cur_pad = in_pad
    for kind, a, b, act in ops:
        if kind == "linear":
            in_f, out_f = a.shape
            out_pad = _round_up(out_f, LANE)
            wp = jnp.zeros((cur_pad, out_pad), jnp.float32).at[:in_f, :out_f].set(a)
            bp = jnp.zeros((1, out_pad), jnp.float32).at[:, :out_f].set(b)
            flat_params += [wp, bp]
            plan.append(("linear", act))
            cur, cur_pad = out_f, out_pad
        elif kind == "affine":
            sp = jnp.ones((1, cur_pad), jnp.float32).at[:, :cur].set(a)
            tp = jnp.zeros((1, cur_pad), jnp.float32).at[:, :cur].set(b)
            flat_params += [sp, tp]
            plan.append(("affine", act))
        else:  # standalone activation
            plan.append(("act", act))
    return tuple(plan), flat_params, in_pad, cur, cur_pad


# ----------------------------------------------------------------------------
# Forward: flatten -> single fused pallas_call -> slice real output column
# ----------------------------------------------------------------------------
def fused_forward(plan, flat_params, x, input_size, out_features, out_pad, in_pad,
                  batch_tile=512):
    B = x.shape[0]
    x = x.reshape(B, -1).astype(jnp.float32)  # torch.flatten(x, 1)

    # batch tiling: multiple of 8 sublanes, up to `batch_tile` rows per block
    TB = min(_round_up(batch_tile, SUBLANE), _round_up(B, SUBLANE))
    B_pad = _round_up(B, TB)
    n_tiles = B_pad // TB
    xp = jnp.zeros((B_pad, in_pad), jnp.float32).at[:B, :input_size].set(x)

    in_specs = [pl.BlockSpec((TB, in_pad), lambda i: (i, 0))]
    for p in flat_params:
        # full-extent weight blocks; constant index_map -> fetched once, reused
        in_specs.append(pl.BlockSpec(p.shape, lambda i: (0, 0)))
    out_spec = pl.BlockSpec((TB, out_pad), lambda i: (i, 0))

    y_pad = pl.pallas_call(
        functools.partial(_fused_mlp_kernel, plan=plan),
        out_shape=jax.ShapeDtypeStruct((B_pad, out_pad), jnp.float32),
        grid=(n_tiles,),
        in_specs=in_specs,
        out_specs=out_spec,
        compiler_params=pltpu.CompilerParams(
            # batch tiles are independent -> megacore / 2-TC sharding on v7x
            dimension_semantics=("parallel",),
            # conservative scoped-VMEM limit, safe on v7x's 64 MiB physical VMEM
            vmem_limit_bytes=32 * 1024 * 1024,
        ),
    )(xp, *flat_params)
    return y_pad[:B, :out_features]


# ----------------------------------------------------------------------------
# Pure-JAX reference (eval-mode semantics of the PyTorch module)
# ----------------------------------------------------------------------------
def reference_forward(params, x):
    x = x.reshape(x.shape[0], -1).astype(jnp.float32)
    for kind, payload in params:
        if kind == "linear":
            w, b = payload
            x = x @ w + b
        elif kind == "relu":
            x = jnp.maximum(x, 0.0)
        elif kind == "leaky_relu":
            x = jnp.where(x >= 0.0, x, LEAKY_SLOPE * x)
        elif kind == "batchnorm":
            g, bt, m, v = payload
            x = (x - m) * jax.lax.rsqrt(v + BN_EPS) * g + bt
        elif kind == "dropout":
            pass
    return x


# ----------------------------------------------------------------------------
if __name__ == "__main__":
    key = jax.random.PRNGKey(0)
    kx, kx2, kp = jax.random.split(key, 3)

    # Input consistent with forward (flatten(x, 1)): (B, 4, 4) -> input_size 16
    input_size = 16
    layers_config = [
        {"name": "Linear", "units": 32},
        {"name": "ReLU"},
        {"name": "BatchNorm"},
        {"name": "Linear", "units": 16},
        {"name": "LeakyReLU"},
        {"name": "Dropout", "rate": 0.1},
    ]

    params = init_params(kp, input_size, layers_config)
    # TODO(synk): BatchNorm uses eval-mode running stats; train-mode batch
    # statistics / running-stat updates are not implemented.
    plan, flat_params, in_pad, out_f, out_pad = prepare_fused_params(params, input_size)

    # --- test 1: small batch, single grid step ---
    x = jax.random.normal(kx, (8, 4, 4), jnp.float32)
    fwd = jax.jit(
        lambda xx: fused_forward(
            plan, flat_params, xx, input_size, out_f, out_pad, in_pad
        )
    )
    y = jax.block_until_ready(fwd(x))
    assert y.shape == (8, 1), y.shape
    y_ref = reference_forward(params, x)
    assert jnp.allclose(y, y_ref, atol=1e-4, rtol=1e-4), float(
        jnp.max(jnp.abs(y - y_ref))
    )

    # --- test 2: batch not a multiple of the tile, multi-tile grid + padding ---
    x2 = jax.random.normal(kx2, (40, 4, 4), jnp.float32)
    fwd2 = jax.jit(
        lambda xx: fused_forward(
            plan, flat_params, xx, input_size, out_f, out_pad, in_pad, batch_tile=16
        )
    )
    y2 = jax.block_until_ready(fwd2(x2))
    assert y2.shape == (40, 1), y2.shape
    y2_ref = reference_forward(params, x2)
    assert jnp.allclose(y2, y2_ref, atol=1e-4, rtol=1e-4), float(
        jnp.max(jnp.abs(y2 - y2_ref))
    )

    print("KERNEL_OK")
</pallas_src>

<mosaic_0001>
module attributes {stable_mosaic.version = 11 : i64} {
  func.func @_fused_mlp_kernel(%arg0: i32, %arg1: memref<8x128xf32, #tpu.memory_space<vmem>>, %arg2: memref<128x128xf32, #tpu.memory_space<vmem>>, %arg3: memref<1x128xf32, #tpu.memory_space<vmem>>, %arg4: memref<1x128xf32, #tpu.memory_space<vmem>>, %arg5: memref<1x128xf32, #tpu.memory_space<vmem>>, %arg6: memref<128x128xf32, #tpu.memory_space<vmem>>, %arg7: memref<1x128xf32, #tpu.memory_space<vmem>>, %arg8: memref<128x128xf32, #tpu.memory_space<vmem>>, %arg9: memref<1x128xf32, #tpu.memory_space<vmem>>, %arg10: memref<8x128xf32, #tpu.memory_space<vmem>>) attributes {dimension_semantics = [#tpu.dimension_semantics<parallel>], iteration_bounds = array<i64: 1>, scalar_prefetch = 0 : i64, scratch_operands = 0 : i64, tpu.core_type = #tpu.core_type<tc>, window_params = [{transform_indices = @transform_0, window_bounds = array<i64: 8, 128>}, {pipeline_mode = #tpu.pipeline_mode<synchronous>, transform_indices = @transform_1, window_bounds = array<i64: 128, 128>}, {pipeline_mode = #tpu.pipeline_mode<synchronous>, transform_indices = @transform_2, window_bounds = array<i64: 1, 128>}, {pipeline_mode = #tpu.pipeline_mode<synchronous>, transform_indices = @transform_3, window_bounds = array<i64: 1, 128>}, {pipeline_mode = #tpu.pipeline_mode<synchronous>, transform_indices = @transform_4, window_bounds = array<i64: 1, 128>}, {pipeline_mode = #tpu.pipeline_mode<synchronous>, transform_indices = @transform_5, window_bounds = array<i64: 128, 128>}, {pipeline_mode = #tpu.pipeline_mode<synchronous>, transform_indices = @transform_6, window_bounds = array<i64: 1, 128>}, {pipeline_mode = #tpu.pipeline_mode<synchronous>, transform_indices = @transform_7, window_bounds = array<i64: 128, 128>}, {pipeline_mode = #tpu.pipeline_mode<synchronous>, transform_indices = @transform_8, window_bounds = array<i64: 1, 128>}, {transform_indices = @transform_9, window_bounds = array<i64: 8, 128>}]} {
    %c0 = arith.constant 0 : index
    %c0_0 = arith.constant 0 : index
    %0 = vector.load %arg1[%c0, %c0_0] : memref<8x128xf32, #tpu.memory_space<vmem>>, vector<8x128xf32>
    %c0_1 = arith.constant 0 : index
    %c0_2 = arith.constant 0 : index
    %1 = vector.load %arg2[%c0_1, %c0_2] : memref<128x128xf32, #tpu.memory_space<vmem>>, vector<128x128xf32>
    %c0_3 = arith.constant 0 : index
    %c0_4 = arith.constant 0 : index
    %2 = vector.load %arg3[%c0_3, %c0_4] : memref<1x128xf32, #tpu.memory_space<vmem>>, vector<1x128xf32>
    %cst = arith.constant dense<0.000000e+00> : vector<8x128xf32>
    %3 = tpu.matmul %0, %1, %cst {dimension_numbers = #tpu.dot_dimension_numbers<[1], [0], [0], [1], [0, 0, 1, 1], [], []>} : vector<8x128xf32>, vector<128x128xf32>, vector<8x128xf32> -> vector<8x128xf32>
    %4 = vector.broadcast %2 : vector<1x128xf32> to vector<8x128xf32>
    %5 = arith.addf %3, %4 : vector<8x128xf32>
    %cst_5 = arith.constant 0.000000e+00 : f32
    %6 = vector.broadcast %cst_5 : f32 to vector<8x128xf32>
    %7 = arith.maximumf %5, %6 : vector<8x128xf32>
    %c0_6 = arith.constant 0 : index
    %c0_7 = arith.constant 0 : index
    %8 = vector.load %arg4[%c0_6, %c0_7] : memref<1x128xf32, #tpu.memory_space<vmem>>, vector<1x128xf32>
    %c0_8 = arith.constant 0 : index
    %c0_9 = arith.constant 0 : index
    %9 = vector.load %arg5[%c0_8, %c0_9] : memref<1x128xf32, #tpu.memory_space<vmem>>, vector<1x128xf32>
    %10 = vector.broadcast %8 : vector<1x128xf32> to vector<8x128xf32>
    %11 = arith.mulf %7, %10 : vector<8x128xf32>
    %12 = vector.broadcast %9 : vector<1x128xf32> to vector<8x128xf32>
    %13 = arith.addf %11, %12 : vector<8x128xf32>
    %c0_10 = arith.constant 0 : index
    %c0_11 = arith.constant 0 : index
    %14 = vector.load %arg6[%c0_10, %c0_11] : memref<128x128xf32, #tpu.memory_space<vmem>>, vector<128x128xf32>
    %c0_12 = arith.constant 0 : index
    %c0_13 = arith.constant 0 : index
    %15 = vector.load %arg7[%c0_12, %c0_13] : memref<1x128xf32, #tpu.memory_space<vmem>>, vector<1x128xf32>
    %cst_14 = arith.constant dense<0.000000e+00> : vector<8x128xf32>
    %16 = tpu.matmul %13, %14, %cst_14 {dimension_numbers = #tpu.dot_dimension_numbers<[1], [0], [0], [1], [0, 0, 1, 1], [], []>} : vector<8x128xf32>, vector<128x128xf32>, vector<8x128xf32> -> vector<8x128xf32>
    %17 = vector.broadcast %15 : vector<1x128xf32> to vector<8x128xf32>
    %18 = arith.addf %16, %17 : vector<8x128xf32>
    %cst_15 = arith.constant 0.000000e+00 : f32
    %19 = vector.broadcast %cst_15 : f32 to vector<8x128xf32>
    %20 = arith.cmpf oge, %18, %19 : vector<8x128xf32>
    %cst_16 = arith.constant 0.00999999977 : f32
    %21 = vector.broadcast %cst_16 : f32 to vector<8x128xf32>
    %22 = arith.mulf %21, %18 : vector<8x128xf32>
    %23 = arith.select %20, %18, %22 : vector<8x128xi1>, vector<8x128xf32>
    %c0_17 = arith.constant 0 : index
    %c0_18 = arith.constant 0 : index
    %24 = vector.load %arg8[%c0_17, %c0_18] : memref<128x128xf32, #tpu.memory_space<vmem>>, vector<128x128xf32>
    %c0_19 = arith.constant 0 : index
    %c0_20 = arith.constant 0 : index
    %25 = vector.load %arg9[%c0_19, %c0_20] : memref<1x128xf32, #tpu.memory_space<vmem>>, vector<1x128xf32>
    %cst_21 = arith.constant dense<0.000000e+00> : vector<8x128xf32>
    %26 = tpu.matmul %23, %24, %cst_21 {dimension_numbers = #tpu.dot_dimension_numbers<[1], [0], [0], [1], [0, 0, 1, 1], [], []>} : vector<8x128xf32>, vector<128x128xf32>, vector<8x128xf32> -> vector<8x128xf32>
    %27 = vector.broadcast %25 : vector<1x128xf32> to vector<8x128xf32>
    %28 = arith.addf %26, %27 : vector<8x128xf32>
    %c0_22 = arith.constant 0 : index
    %c0_23 = arith.constant 0 : index
    %29 = vector.load %arg10[%c0_22, %c0_23] : memref<8x128xf32, #tpu.memory_space<vmem>>, vector<8x128xf32>
    tpu.vector_store %arg10[%c0_22, %c0_23], %28 {strides = array<i32>} : memref<8x128xf32, #tpu.memory_space<vmem>>, vector<8x128xf32>,
    return
  }
  func.func @transform_0(%arg0: i32) -> (i32, i32) {
    %c0_i32 = arith.constant 0 : i32
    %c0_i32_0 = arith.constant 0 : i32
    return %arg0, %c0_i32 : i32, i32
  }
  func.func @transform_1(%arg0: i32) -> (i32, i32) {
    %c0_i32 = arith.constant 0 : i32
    %c0_i32_0 = arith.constant 0 : i32
    %c0_i32_1 = arith.constant 0 : i32
    return %c0_i32, %c0_i32_0 : i32, i32
  }
  func.func @transform_2(%arg0: i32) -> (i32, i32) {
    %c0_i32 = arith.constant 0 : i32
    %c0_i32_0 = arith.constant 0 : i32
    %c0_i32_1 = arith.constant 0 : i32
    return %c0_i32, %c0_i32_0 : i32, i32
  }
  func.func @transform_3(%arg0: i32) -> (i32, i32) {
    %c0_i32 = arith.constant 0 : i32
    %c0_i32_0 = arith.constant 0 : i32
    %c0_i32_1 = arith.constant 0 : i32
    return %c0_i32, %c0_i32_0 : i32, i32
  }
  func.func @transform_4(%arg0: i32) -> (i32, i32) {
    %c0_i32 = arith.constant 0 : i32
    %c0_i32_0 = arith.constant 0 : i32
    %c0_i32_1 = arith.constant 0 : i32
    return %c0_i32, %c0_i32_0 : i32, i32
  }
  func.func @transform_5(%arg0: i32) -> (i32, i32) {
    %c0_i32 = arith.constant 0 : i32
    %c0_i32_0 = arith.constant 0 : i32
    %c0_i32_1 = arith.constant 0 : i32
    return %c0_i32, %c0_i32_0 : i32, i32
  }
  func.func @transform_6(%arg0: i32) -> (i32, i32) {
    %c0_i32 = arith.constant 0 : i32
    %c0_i32_0 = arith.constant 0 : i32
    %c0_i32_1 = arith.constant 0 : i32
    return %c0_i32, %c0_i32_0 : i32, i32
  }
  func.func @transform_7(%arg0: i32) -> (i32, i32) {
    %c0_i32 = arith.constant 0 : i32
    %c0_i32_0 = arith.constant 0 : i32
    %c0_i32_1 = arith.constant 0 : i32
    return %c0_i32, %c0_i32_0 : i32, i32
  }
  func.func @transform_8(%arg0: i32) -> (i32, i32) {
    %c0_i32 = arith.constant 0 : i32
    %c0_i32_0 = arith.constant 0 : i32
    %c0_i32_1 = arith.constant 0 : i32
    return %c0_i32, %c0_i32_0 : i32, i32
  }
  func.func @transform_9(%arg0: i32) -> (i32, i32) {
    %c0_i32 = arith.constant 0 : i32
    %c0_i32_0 = arith.constant 0 : i32
    return %arg0, %c0_i32 : i32, i32
  }
}

</mosaic_0001>

<llo_original>
// kernel: _lambda_.1
$region0: #{_lambda_.1}
  #allocation0 [shape = 'u32[]', space=smem, size = 0x4, offset = 0x4, fixed_abs, tag = 'smem constant byte address 0x4 - core index']
  #allocation1 [shape = 'u32[144,128]{1,0:T(1,128)}', space=vmem, size = 0x12000, scoped, tag = 'internal scratch']
  %s0 = inlined_call_operand.vmem [shape: f32[8,128], index: 0, kind: input, shape index: {}]
  %s1 = inlined_call_operand.hbm [shape: f32[128,128], index: 1, kind: input, shape index: {}]
  %s2 = inlined_call_operand.vmem [shape: f32[1,128], index: 2, kind: input, shape index: {}]
  %s3 = inlined_call_operand.vmem [shape: f32[1,128], index: 3, kind: input, shape index: {}]
  %s4 = inlined_call_operand.vmem [shape: f32[1,128], index: 4, kind: input, shape index: {}]
  %s5 = inlined_call_operand.hbm [shape: f32[128,128], index: 5, kind: input, shape index: {}]
  %s6 = inlined_call_operand.vmem [shape: f32[1,128], index: 6, kind: input, shape index: {}]
  %s7 = inlined_call_operand.hbm [shape: f32[128,128], index: 7, kind: input, shape index: {}]
  %s8 = inlined_call_operand.vmem [shape: f32[1,128], index: 8, kind: input, shape index: {}]
  %s9 = inlined_call_operand.vmem [shape: f32[8,128], index: 9, kind: output, shape index: {}]
  %s10 = sld [smem:[#allocation0]]
  $region58: #{_lambda_.1} parent=0
    _
  %s12 = ssub.s32 1, %s10
  %s13 = scalar_select 0, %s12, %s10
  $region1: #{_lambda_.1} parent=0
    #allocation2 [shape = 'u8[65536]{0}', space=vmem, size = 0x10000, scoped, tag = 'input window, operand 1, single buffered']
    #allocation3 [shape = 's32[1]{0}', space=sflag, size = 0x4, scoped, tag = 'scoped memory for _lambda_.1']
    #allocation4 [shape = 'u8[65536]{0}', space=vmem, size = 0x10000, scoped, tag = 'input window, operand 5, single buffered']
    #allocation5 [shape = 's32[1]{0}', space=sflag, size = 0x4, scoped, tag = 'scoped memory for _lambda_.1']
    #allocation6 [shape = 'u8[65536]{0}', space=vmem, size = 0x10000, scoped, tag = 'input window, operand 7, single buffered']
    %14 = vsyncpa [#allocation3], 0
    %15 = vsyncpa [#allocation5], 0
    // Predicated region
    $region2: #{_lambda_.1} parent=1 // pred_check
      _
    $region3: #{_lambda_.1} parent=1 // pred_check_branch
      %17 = sbr.rel (0) target = $region5
    $region4: #{_lambda_.1} parent=1 // pred_region
      _
    $region5: #{_lambda_.1} parent=1 // pred_fallthru
      _
    // Predicated region
    $region6: #{_lambda_.1} parent=1 // pred_check
      _
    $region7: #{_lambda_.1} parent=1 // pred_check_branch
      %19 = sbr.rel (0) target = $region9
    $region8: #{_lambda_.1} parent=1 // pred_region
      %s21 = ssub.s32 2048, 2048
      %22 = vsyncadd [#allocation3], %s21
      %s23 = sshll.u32 [#allocation2], 4
      %s24 = int_to_ptr.vmem [resolvable:$true] %s23
      %29 = dma.hbm_to_vmem [thread:$0]  %s1, 2048, %s24, [#allocation3], 128, 128, 8
    $region9: #{_lambda_.1} parent=1 // pred_fallthru
      _
    // Predicated region
    $region10: #{_lambda_.1} parent=1 // pred_check
      _
    $region11: #{_lambda_.1} parent=1 // pred_check_branch
      %31 = sbr.rel (0) target = $region13
    $region12: #{_lambda_.1} parent=1 // pred_region
      _
    $region13: #{_lambda_.1} parent=1 // pred_fallthru
      _
    // Predicated region
    $region14: #{_lambda_.1} parent=1 // pred_check
      _
    $region15: #{_lambda_.1} parent=1 // pred_check_branch
      %33 = sbr.rel (0) target = $region17
    $region16: #{_lambda_.1} parent=1 // pred_region
      _
    $region17: #{_lambda_.1} parent=1 // pred_fallthru
      _
    // Predicated region
    $region18: #{_lambda_.1} parent=1 // pred_check
      _
    $region19: #{_lambda_.1} parent=1 // pred_check_branch
      %35 = sbr.rel (0) target = $region21
    $region20: #{_lambda_.1} parent=1 // pred_region
      _
    $region21: #{_lambda_.1} parent=1 // pred_fallthru
      _
    // Predicated region
    $region22: #{_lambda_.1} parent=1 // pred_check
      _
    $region23: #{_lambda_.1} parent=1 // pred_check_branch
      %37 = sbr.rel (0) target = $region25
    $region24: #{_lambda_.1} parent=1 // pred_region
      %s39 = ssub.s32 2048, 2048
      %40 = vsyncadd [#allocation5], %s39
      %s41 = sshll.u32 [#allocation4], 4
      %s42 = int_to_ptr.vmem [resolvable:$true] %s41
      %47 = dma.hbm_to_vmem [thread:$0]  %s5, 2048, %s42, [#allocation5], 128, 128, 8
    $region25: #{_lambda_.1} parent=1 // pred_fallthru
      _
    // Predicated region
    $region26: #{_lambda_.1} parent=1 // pred_check
      _
    $region27: #{_lambda_.1} parent=1 // pred_check_branch
      %49 = sbr.rel (0) target = $region29
    $region28: #{_lambda_.1} parent=1 // pred_region
      _
    $region29: #{_lambda_.1} parent=1 // pred_fallthru
      _
    // Predicated region
    $region30: #{_lambda_.1} parent=1 // pred_check
      _
    $region31: #{_lambda_.1} parent=1 // pred_check_branch
      %51 = sbr.rel (0) target = $region33
    $region32: #{_lambda_.1} parent=1 // pred_region
      %s53 = ssub.s32 2048, 2048
      %54 = vsyncadd [#allocation5], %s53
      %s55 = sshll.u32 [#allocation6], 4
      %s56 = int_to_ptr.vmem [resolvable:$true] %s55
      %61 = dma.hbm_to_vmem [thread:$0]  %s7, 2048, %s56, [#allocation5], 128, 128, 8
    $region33: #{_lambda_.1} parent=1 // pred_fallthru
      _
    // Predicated region
    $region34: #{_lambda_.1} parent=1 // pred_check
      _
    $region35: #{_lambda_.1} parent=1 // pred_check_branch
      %63 = sbr.rel (0) target = $region37
    $region36: #{_lambda_.1} parent=1 // pred_region
      _
    $region37: #{_lambda_.1} parent=1 // pred_fallthru
      _
    // Predicated region
    $region38: #{_lambda_.1} parent=1 // pred_check
      _
    $region39: #{_lambda_.1} parent=1 // pred_check_branch
      %65 = sbr.rel (0) target = $region41
    $region40: #{_lambda_.1} parent=1 // pred_region
      %66 = dma.done [#allocation3], 2048
    $region41: #{_lambda_.1} parent=1 // pred_fallthru
      _
    // Predicated region
    $region42: #{_lambda_.1} parent=1 // pred_check
      _
    $region43: #{_lambda_.1} parent=1 // pred_check_branch
      %68 = sbr.rel (0) target = $region45
    $region44: #{_lambda_.1} parent=1 // pred_region
      %69 = dma.done [#allocation5], 2048
    $region45: #{_lambda_.1} parent=1 // pred_fallthru
      _
    // Predicated region
    $region46: #{_lambda_.1} parent=1 // pred_check
      _
    $region47: #{_lambda_.1} parent=1 // pred_check_branch
      %71 = sbr.rel (0) target = $region49
    $region48: #{_lambda_.1} parent=1 // pred_region
      %72 = dma.done [#allocation5], 2048
    $region49: #{_lambda_.1} parent=1 // pred_fallthru
      _
    %v73 = vld [vmem:[%s0] sm:$0xff]
    %v74 = vld [vmem:[#allocation2] sm:$0xff]
    %v75 = vld [vmem:[#allocation2 + $0x8] sm:$0xff]
    %v76 = vld [vmem:[#allocation2 + $0x10] sm:$0xff]
    %v77 = vld [vmem:[#allocation2 + $0x18] sm:$0xff]
    %v78 = vld [vmem:[#allocation2 + $0x20] sm:$0xff]
    %v79 = vld [vmem:[#allocation2 + $0x28] sm:$0xff]
    %v80 = vld [vmem:[#allocation2 + $0x30] sm:$0xff]
    %v81 = vld [vmem:[#allocation2 + $0x38] sm:$0xff]
    %v82 = vld [vmem:[#allocation2 + $0x40] sm:$0xff]
    %v83 = vld [vmem:[#allocation2 + $0x48] sm:$0xff]
    %v84 = vld [vmem:[#allocation2 + $0x50] sm:$0xff]
    %v85 = vld [vmem:[#allocation2 + $0x58] sm:$0xff]
    %v86 = vld [vmem:[#allocation2 + $0x60] sm:$0xff]
    %v87 = vld [vmem:[#allocation2 + $0x68] sm:$0xff]
    %v88 = vld [vmem:[#allocation2 + $0x70] sm:$0xff]
    %v89 = vld [vmem:[#allocation2 + $0x78] sm:$0xff]
    %v90 = vld [vmem:[%s2] sm:$0x1]
    %v92 = vlaneseq
    %v93 = vshrl.u32 %v92, 7
    %v94 = vsub.s32 0, %v93
    %v95 = vrot.slane %v90, %v94
    %97 = vmatprep.subr.mxu0 0.0
    %98 = vmatpush1.msra.mxu0 %v74
    %99 = vmatprep.subr.mxu0 0.0
    %100 = vmatpush1.msra.mxu0 %v75
    %101 = vmatprep.subr.mxu0 0.0
    %102 = vmatpush1.msra.mxu0 %v76
    %103 = vmatprep.subr.mxu0 0.0
    %104 = vmatpush1.msra.mxu0 %v77
    %105 = vmatprep.subr.mxu0 0.0
    %106 = vmatpush1.msra.mxu0 %v78
    %107 = vmatprep.subr.mxu0 0.0
    %108 = vmatpush1.msra.mxu0 %v79
    %109 = vmatprep.subr.mxu0 0.0
    %110 = vmatpush1.msra.mxu0 %v80
    %111 = vmatprep.subr.mxu0 0.0
    %112 = vmatpush1.msra.mxu0 %v81
    %113 = vmatprep.subr.mxu0 0.0
    %114 = vmatpush1.msra.mxu0 %v82
    %115 = vmatprep.subr.mxu0 0.0
    %116 = vmatpush1.msra.mxu0 %v83
    %117 = vmatprep.subr.mxu0 0.0
    %118 = vmatpush1.msra.mxu0 %v84
    %119 = vmatprep.subr.mxu0 0.0
    %120 = vmatpush1.msra.mxu0 %v85
    %121 = vmatprep.subr.mxu0 0.0
    %122 = vmatpush1.msra.mxu0 %v86
    %123 = vmatprep.subr.mxu0 0.0
    %124 = vmatpush1.msra.mxu0 %v87
    %125 = vmatprep.subr.mxu0 0.0
    %126 = vmatpush1.msra.mxu0 %v88
    %127 = vmatprep.subr.mxu0 0.0
    %128 = vmatpush1.msra.mxu0 %v89
    %129 = vmatprep.subr.mxu0 0.0
    %130 = vmatpush1.msra.mxu0 0.0
    %131 = vmatprep.subr.mxu0 0.0
    %132 = vmatpush1.msra.mxu0 0.0
    %133 = vmatprep.subr.mxu0 0.0
    %134 = vmatpush1.msra.mxu0 0.0
    %135 = vmatprep.subr.mxu0 0.0
    %136 = vmatpush1.msra.mxu0 0.0
    %137 = vmatprep.subr.mxu0 0.0
    %138 = vmatpush1.msra.mxu0 0.0
    %139 = vmatprep.subr.mxu0 0.0
    %140 = vmatpush1.msra.mxu0 0.0
    %141 = vmatprep.subr.mxu0 0.0
    %142 = vmatpush1.msra.mxu0 0.0
    %143 = vmatprep.subr.mxu0 0.0
    %144 = vmatpush1.msra.mxu0 0.0
    %145 = vmatprep.subr.mxu0 0.0
    %146 = vmatpush1.msra.mxu0 0.0
    %147 = vmatprep.subr.mxu0 0.0
    %148 = vmatpush1.msra.mxu0 0.0
    %149 = vmatprep.subr.mxu0 0.0
    %150 = vmatpush1.msra.mxu0 0.0
    %151 = vmatprep.subr.mxu0 0.0
    %152 = vmatpush1.msra.mxu0 0.0
    %153 = vmatprep.subr.mxu0 0.0
    %154 = vmatpush1.msra.mxu0 0.0
    %155 = vmatprep.subr.mxu0 0.0
    %156 = vmatpush1.msra.mxu0 0.0
    %157 = vmatprep.subr.mxu0 0.0
    %158 = vmatpush1.msra.mxu0 0.0
    %159 = vmatprep.subr.mxu0 0.0
    %160 = vmatpush1.msra.mxu0 0.0
    %161 = vmatprep.mubr.f32.mxu0 0.0
    %162 = vmatmul.mubr.f32.gmra.mrb[0].mxu0 %v73
    %v163 = vpop.f32.mrb[0].mxu0
    %v164 = vadd.f32 %v95, %v163
    %v165 = vpop.f32.mrb[0].mxu0
    %166 = vdwg.mxu0
    %v167 = vmax.f32 %v164, 0.0
    %v168 = vld [vmem:[%s3] sm:$0x1]
    %v169 = vld [vmem:[%s4] sm:$0x1]
    %v171 = vlaneseq
    %v172 = vshrl.u32 %v171, 7
    %v173 = vsub.s32 0, %v172
    %v174 = vrot.slane %v168, %v173
    %v176 = vmul.f32 %v167, %v174
    %v178 = vlaneseq
    %v179 = vshrl.u32 %v178, 7
    %v180 = vsub.s32 0, %v179
    %v181 = vrot.slane %v169, %v180
    %v183 = vadd.f32 %v176, %v181
    %v184 = vld [vmem:[#allocation4] sm:$0xff]
    %v185 = vld [vmem:[#allocation4 + $0x8] sm:$0xff]
    %v186 = vld [vmem:[#allocation4 + $0x10] sm:$0xff]
    %v187 = vld [vmem:[#allocation4 + $0x18] sm:$0xff]
    %v188 = vld [vmem:[#allocation4 + $0x20] sm:$0xff]
    %v189 = vld [vmem:[#allocation4 + $0x28] sm:$0xff]
    %v190 = vld [vmem:[#allocation4 + $0x30] sm:$0xff]
    %v191 = vld [vmem:[#allocation4 + $0x38] sm:$0xff]
    %v192 = vld [vmem:[#allocation4 + $0x40] sm:$0xff]
    %v193 = vld [vmem:[#allocation4 + $0x48] sm:$0xff]
    %v194 = vld [vmem:[#allocation4 + $0x50] sm:$0xff]
    %v195 = vld [vmem:[#allocation4 + $0x58] sm:$0xff]
    %v196 = vld [vmem:[#allocation4 + $0x60] sm:$0xff]
    %v197 = vld [vmem:[#allocation4 + $0x68] sm:$0xff]
    %v198 = vld [vmem:[#allocation4 + $0x70] sm:$0xff]
    %v199 = vld [vmem:[#allocation4 + $0x78] sm:$0xff]
    %v200 = vld [vmem:[%s6] sm:$0x1]
    %v202 = vlaneseq
    %v203 = vshrl.u32 %v202, 7
    %v204 = vsub.s32 0, %v203
    %v205 = vrot.slane %v200, %v204
    %207 = vmatprep.subr.mxu0 0.0
    %208 = vmatpush1.msra.mxu0 %v184
    %209 = vmatprep.subr.mxu0 0.0
    %210 = vmatpush1.msra.mxu0 %v185
    %211 = vmatprep.subr.mxu0 0.0
    %212 = vmatpush1.msra.mxu0 %v186
    %213 = vmatprep.subr.mxu0 0.0
    %214 = vmatpush1.msra.mxu0 %v187
    %215 = vmatprep.subr.mxu0 0.0
    %216 = vmatpush1.msra.mxu0 %v188
    %217 = vmatprep.subr.mxu0 0.0
    %218 = vmatpush1.msra.mxu0 %v189
    %219 = vmatprep.subr.mxu0 0.0
    %220 = vmatpush1.msra.mxu0 %v190
    %221 = vmatprep.subr.mxu0 0.0
    %222 = vmatpush1.msra.mxu0 %v191
    %223 = vmatprep.subr.mxu0 0.0
    %224 = vmatpush1.msra.mxu0 %v192
    %225 = vmatprep.subr.mxu0 0.0
    %226 = vmatpush1.msra.mxu0 %v193
    %227 = vmatprep.subr.mxu0 0.0
    %228 = vmatpush1.msra.mxu0 %v194
    %229 = vmatprep.subr.mxu0 0.0
    %230 = vmatpush1.msra.mxu0 %v195
    %231 = vmatprep.subr.mxu0 0.0
    %232 = vmatpush1.msra.mxu0 %v196
    %233 = vmatprep.subr.mxu0 0.0
    %234 = vmatpush1.msra.mxu0 %v197
    %235 = vmatprep.subr.mxu0 0.0
    %236 = vmatpush1.msra.mxu0 %v198
    %237 = vmatprep.subr.mxu0 0.0
    %238 = vmatpush1.msra.mxu0 %v199
    %239 = vmatprep.subr.mxu0 0.0
    %240 = vmatpush1.msra.mxu0 0.0
    %241 = vmatprep.subr.mxu0 0.0
    %242 = vmatpush1.msra.mxu0 0.0
    %243 = vmatprep.subr.mxu0 0.0
    %244 = vmatpush1.msra.mxu0 0.0
    %245 = vmatprep.subr.mxu0 0.0
    %246 = vmatpush1.msra.mxu0 0.0
    %247 = vmatprep.subr.mxu0 0.0
    %248 = vmatpush1.msra.mxu0 0.0
    %249 = vmatprep.subr.mxu0 0.0
    %250 = vmatpush1.msra.mxu0 0.0
    %251 = vmatprep.subr.mxu0 0.0
    %252 = vmatpush1.msra.mxu0 0.0
    %253 = vmatprep.subr.mxu0 0.0
    %254 = vmatpush1.msra.mxu0 0.0
    %255 = vmatprep.subr.mxu0 0.0
    %256 = vmatpush1.msra.mxu0 0.0
    %257 = vmatprep.subr.mxu0 0.0
    %258 = vmatpush1.msra.mxu0 0.0
    %259 = vmatprep.subr.mxu0 0.0
    %260 = vmatpush1.msra.mxu0 0.0
    %261 = vmatprep.subr.mxu0 0.0
    %262 = vmatpush1.msra.mxu0 0.0
    %263 = vmatprep.subr.mxu0 0.0
    %264 = vmatpush1.msra.mxu0 0.0
    %265 = vmatprep.subr.mxu0 0.0
    %266 = vmatpush1.msra.mxu0 0.0
    %267 = vmatprep.subr.mxu0 0.0
    %268 = vmatpush1.msra.mxu0 0.0
    %269 = vmatprep.subr.mxu0 0.0
    %270 = vmatpush1.msra.mxu0 0.0
    %271 = vmatprep.mubr.f32.mxu0 0.0
    %272 = vmatmul.mubr.f32.gmra.mrb[0].mxu0 %v183
    %v273 = vpop.f32.mrb[0].mxu0
    %v274 = vadd.f32 %v205, %v273
    %v275 = vpop.f32.mrb[0].mxu0
    %276 = vdwg.mxu0
    %vm277 = vcmp.ge.f32.partialorder %v274, 0.0
    %v278 = vmul.f32 %v274, 0.01
    %v279 = vsel %vm277, %v274, %v278
    %v280 = vld [vmem:[#allocation6] sm:$0xff]
    %v281 = vld [vmem:[#allocation6 + $0x8] sm:$0xff]
    %v282 = vld [vmem:[#allocation6 + $0x10] sm:$0xff]
    %v283 = vld [vmem:[#allocation6 + $0x18] sm:$0xff]
    %v284 = vld [vmem:[#allocation6 + $0x20] sm:$0xff]
    %v285 = vld [vmem:[#allocation6 + $0x28] sm:$0xff]
    %v286 = vld [vmem:[#allocation6 + $0x30] sm:$0xff]
    %v287 = vld [vmem:[#allocation6 + $0x38] sm:$0xff]
    %v288 = vld [vmem:[#allocation6 + $0x40] sm:$0xff]
    %v289 = vld [vmem:[#allocation6 + $0x48] sm:$0xff]
    %v290 = vld [vmem:[#allocation6 + $0x50] sm:$0xff]
    %v291 = vld [vmem:[#allocation6 + $0x58] sm:$0xff]
    %v292 = vld [vmem:[#allocation6 + $0x60] sm:$0xff]
    %v293 = vld [vmem:[#allocation6 + $0x68] sm:$0xff]
    %v294 = vld [vmem:[#allocation6 + $0x70] sm:$0xff]
    %v295 = vld [vmem:[#allocation6 + $0x78] sm:$0xff]
    %v296 = vld [vmem:[%s8] sm:$0x1]
    %v298 = vlaneseq
    %v299 = vshrl.u32 %v298, 7
    %v300 = vsub.s32 0, %v299
    %v301 = vrot.slane %v296, %v300
    %303 = vmatprep.subr.mxu0 0.0
    %304 = vmatpush1.msra.mxu0 %v280
    %305 = vmatprep.subr.mxu0 0.0
    %306 = vmatpush1.msra.mxu0 %v281
    %307 = vmatprep.subr.mxu0 0.0
    %308 = vmatpush1.msra.mxu0 %v282
    %309 = vmatprep.subr.mxu0 0.0
    %310 = vmatpush1.msra.mxu0 %v283
    %311 = vmatprep.subr.mxu0 0.0
    %312 = vmatpush1.msra.mxu0 %v284
    %313 = vmatprep.subr.mxu0 0.0
    %314 = vmatpush1.msra.mxu0 %v285
    %315 = vmatprep.subr.mxu0 0.0
    %316 = vmatpush1.msra.mxu0 %v286
    %317 = vmatprep.subr.mxu0 0.0
    %318 = vmatpush1.msra.mxu0 %v287
    %319 = vmatprep.subr.mxu0 0.0
    %320 = vmatpush1.msra.mxu0 %v288
    %321 = vmatprep.subr.mxu0 0.0
    %322 = vmatpush1.msra.mxu0 %v289
    %323 = vmatprep.subr.mxu0 0.0
    %324 = vmatpush1.msra.mxu0 %v290
    %325 = vmatprep.subr.mxu0 0.0
    %326 = vmatpush1.msra.mxu0 %v291
    %327 = vmatprep.subr.mxu0 0.0
    %328 = vmatpush1.msra.mxu0 %v292
    %329 = vmatprep.subr.mxu0 0.0
    %330 = vmatpush1.msra.mxu0 %v293
    %331 = vmatprep.subr.mxu0 0.0
    %332 = vmatpush1.msra.mxu0 %v294
    %333 = vmatprep.subr.mxu0 0.0
    %334 = vmatpush1.msra.mxu0 %v295
    %335 = vmatprep.subr.mxu0 0.0
    %336 = vmatpush1.msra.mxu0 0.0
    %337 = vmatprep.subr.mxu0 0.0
    %338 = vmatpush1.msra.mxu0 0.0
    %339 = vmatprep.subr.mxu0 0.0
    %340 = vmatpush1.msra.mxu0 0.0
    %341 = vmatprep.subr.mxu0 0.0
    %342 = vmatpush1.msra.mxu0 0.0
    %343 = vmatprep.subr.mxu0 0.0
    %344 = vmatpush1.msra.mxu0 0.0
    %345 = vmatprep.subr.mxu0 0.0
    %346 = vmatpush1.msra.mxu0 0.0
    %347 = vmatprep.subr.mxu0 0.0
    %348 = vmatpush1.msra.mxu0 0.0
    %349 = vmatprep.subr.mxu0 0.0
    %350 = vmatpush1.msra.mxu0 0.0
    %351 = vmatprep.subr.mxu0 0.0
    %352 = vmatpush1.msra.mxu0 0.0
    %353 = vmatprep.subr.mxu0 0.0
    %354 = vmatpush1.msra.mxu0 0.0
    %355 = vmatprep.subr.mxu0 0.0
    %356 = vmatpush1.msra.mxu0 0.0
    %357 = vmatprep.subr.mxu0 0.0
    %358 = vmatpush1.msra.mxu0 0.0
    %359 = vmatprep.subr.mxu0 0.0
    %360 = vmatpush1.msra.mxu0 0.0
    %361 = vmatprep.subr.mxu0 0.0
    %362 = vmatpush1.msra.mxu0 0.0
    %363 = vmatprep.subr.mxu0 0.0
    %364 = vmatpush1.msra.mxu0 0.0
    %365 = vmatprep.subr.mxu0 0.0
    %366 = vmatpush1.msra.mxu0 0.0
    %367 = vmatprep.mubr.f32.mxu0 0.0
    %368 = vmatmul.mubr.f32.gmra.mrb[0].mxu0 %v279
    %v369 = vpop.f32.mrb[0].mxu0
    %v370 = vadd.f32 %v301, %v369
    %v371 = vpop.f32.mrb[0].mxu0
    %372 = vdwg.mxu0
    %373 = vst [vmem:[%s9] sm:$0xff] %v370
    // Predicated region
    $region50: #{_lambda_.1} parent=1 // pred_check
      _
    $region51: #{_lambda_.1} parent=1 // pred_check_branch
      %375 = sbr.rel (0) target = $region53
    $region52: #{_lambda_.1} parent=1 // pred_region
      _
    $region53: #{_lambda_.1} parent=1 // pred_fallthru
      _
    // Predicated region
    $region54: #{_lambda_.1} parent=1 // pred_check
      _
    $region55: #{_lambda_.1} parent=1 // pred_check_branch
      %377 = sbr.rel (0) target = $region57
    $region56: #{_lambda_.1} parent=1 // pred_region
      _
    $region57: #{_lambda_.1} parent=1 // pred_fallthru
      _
    %378 = vsyncpa [#allocation3], 1
    %379 = vsyncpa [#allocation5], 1

</llo_original>
